<compile_context>
chip_gen: v7x
topology: tpu7x:2x2x1
jax: 0.10.0
libtpu: 0.0.40
codegen_flags: <defaults>
</compile_context>

<pallas_src>
import jax
import jax.numpy as jnp
from jax.experimental import pallas as pl
from jax.experimental.pallas import tpu as pltpu

HIDDEN = 256
LANE = 128
SUBLANE = 8


def _round_up(x, m):
    return ((x + m - 1) // m) * m


# ----------------------------------------------------------------------------
# Kernel
# ----------------------------------------------------------------------------
def actor_kernel(x_ref, w1_ref, b1_ref, w2_ref, b2_ref, wh_ref, bh_ref,
                 mask_ref, out_ref):
    """One batch tile: fc1+ReLU -> fc2+ReLU -> fused heads -> packed output."""
    cd = w1_ref.dtype  # compute dtype for MXU inputs (bf16); f32 accumulation.

    # ---- fc layer 1: Linear(obs_dim, 256) + ReLU ----
    h1 = jnp.dot(x_ref[...].astype(cd), w1_ref[...],
                 preferred_element_type=jnp.float32) + b1_ref[...]
    h1 = jnp.maximum(h1, 0.0)

    # ---- fc layer 2: Linear(256, 256) + ReLU ----
    h2 = jnp.dot(h1.astype(cd), w2_ref[...],
                 preferred_element_type=jnp.float32) + b2_ref[...]
    h2 = jnp.maximum(h2, 0.0)

    # ---- fused heads: one matmul for [mean || log_std || zero pad] ----
    heads = jnp.dot(h2.astype(cd), wh_ref[...],
                    preferred_element_type=jnp.float32) + bh_ref[...]

    # Columns [0, act_dim)          -> mean (raw)
    # Columns [act_dim, 2*act_dim)  -> std = exp(clamp(log_std, -20, 2))
    # Columns >= 2*act_dim          -> zero padding (mask=0, left as raw zeros;
    #                                  sliced away in the wrapper, never read).
    std_vals = jnp.exp(jnp.clip(heads, -20.0, 2.0))       # EUP; clamp first.
    out_ref[...] = jnp.where(mask_ref[...] != 0, std_vals, heads).astype(out_ref.dtype)


# ----------------------------------------------------------------------------
# One-time parameter packing (keep OUT of the per-call hot path)
# ----------------------------------------------------------------------------
def pack_params(params, compute_dtype=jnp.bfloat16):
    """Cast / concat / pad weights once; returns (packed_arrays, act_dim)."""
    w1, b1, w2, b2, wm, bm, ws, bs = params
    act_dim = wm.shape[1]
    head_n = max(LANE, _round_up(2 * act_dim, LANE))

    wh = jnp.concatenate([wm, ws], axis=1).astype(compute_dtype)
    bh = jnp.concatenate([bm, bs], axis=1).astype(jnp.float32)
    pad_n = head_n - 2 * act_dim
    if pad_n:
        wh = jnp.pad(wh, ((0, 0), (0, pad_n)))
        bh = jnp.pad(bh, ((0, 0), (0, pad_n)))

    # std-lane selector: 1 on [act_dim, 2*act_dim), 0 elsewhere (incl. padding).
    col = jnp.arange(head_n, dtype=jnp.int32)[None, :]
    std_mask = ((col >= act_dim) & (col < 2 * act_dim)).astype(jnp.int32)

    packed = (w1.astype(compute_dtype), b1.astype(jnp.float32),
              w2.astype(compute_dtype), b2.astype(jnp.float32),
              wh, bh, std_mask)
    return packed, act_dim


def _choose_batch_tile(B, batch_tile, obs_dim, head_n):
    """Pick a batch tile: big (amortize ~0.35us/step), >=2 steps when possible,
    8-aligned (or == B), and inside a conservative VMEM budget."""
    if B <= 2 * SUBLANE:
        # Tiny batch: one full-batch tile; launch latency dominates anyway.
        return B
    # Aim for at least 2 grid steps so both v7x TensorCores get work.
    tb = min(_round_up(batch_tile, SUBLANE), _round_up(pl.cdiv(B, 2), SUBLANE))
    # VMEM guardrail (v7x: 32 MiB default scoped / 64 MiB physical): rough
    # per-row cost = double-buffered state + output tiles + f32 intermediates.
    bytes_per_row = 4 * (2 * obs_dim + 2 * head_n + 2 * HIDDEN)
    max_tb = max(SUBLANE, ((24 << 20) // bytes_per_row) // SUBLANE * SUBLANE)
    return min(tb, max_tb)


# ----------------------------------------------------------------------------
# Forward wrapper
# ----------------------------------------------------------------------------
def actor_forward(state, packed_params, act_dim, *, batch_tile=1024,
                  out_dtype=jnp.float32):
    """Fused Actor forward. state: (B, obs_dim) f32, packed_params from
    pack_params(). Returns (mean, std), each (B, act_dim).
    (On v5e, out_dtype=jnp.bfloat16 halves output HBM traffic if callers
    tolerate bf16 mean/std.)"""
    w1c, b1, w2c, b2, wh, bh, std_mask = packed_params
    B, obs_dim = state.shape
    head_n = wh.shape[1]

    tb = _choose_batch_tile(B, batch_tile, obs_dim, head_n)
    grid = (pl.cdiv(B, tb),)

    def full(a):
        # Whole-array block, same block index every step -> stays resident in
        # VMEM across grid steps.  (pipeline_mode=pl.Buffered(1) would drop the
        # second buffer; at these sizes the extra copy is <0.25 MiB, so we keep
        # the default double-buffering.)
        return pl.BlockSpec(a.shape, lambda i: (0,) * a.ndim)

    out = pl.pallas_call(
        actor_kernel,
        out_shape=jax.ShapeDtypeStruct((B, head_n), out_dtype),
        grid=grid,
        in_specs=[
            pl.BlockSpec((tb, obs_dim), lambda i: (i, 0)),  # state: tiled over batch
            full(w1c), full(b1),
            full(w2c), full(b2),
            full(wh), full(bh),
            full(std_mask),
        ],
        out_specs=pl.BlockSpec((tb, head_n), lambda i: (i, 0)),
        compiler_params=pltpu.CompilerParams(dimension_semantics=("parallel",)),
    )(state, w1c, b1, w2c, b2, wh, bh, std_mask)

    mean = out[:, :act_dim]
    std = out[:, act_dim:2 * act_dim]
    return mean, std


# ----------------------------------------------------------------------------
# Init + pure-JAX reference
# ----------------------------------------------------------------------------
def init_params(key, obs_dim, act_dim):
    """Deterministic init mimicking PyTorch nn.Linear default (U[-1/sqrt(fan_in), +])."""
    def linear(k, fan_in, fan_out):
        kw, kb = jax.random.split(k)
        bound = 1.0 / jnp.sqrt(fan_in)
        w = jax.random.uniform(kw, (fan_in, fan_out), jnp.float32, -bound, bound)
        b = jax.random.uniform(kb, (1, fan_out), jnp.float32, -bound, bound)
        return w, b

    k1, k2, k3, k4 = jax.random.split(key, 4)
    w1, b1 = linear(k1, obs_dim, HIDDEN)
    w2, b2 = linear(k2, HIDDEN, HIDDEN)
    wm, bm = linear(k3, HIDDEN, act_dim)
    ws, bs = linear(k4, HIDDEN, act_dim)
    return (w1, b1, w2, b2, wm, bm, ws, bs)


def actor_forward_ref(state, params, compute_dtype=jnp.bfloat16):
    """Pure-JAX reference using the same bf16-input / f32-accumulate recipe."""
    w1, b1, w2, b2, wm, bm, ws, bs = params
    cd = compute_dtype
    dot = lambda a, w: jnp.dot(a.astype(cd), w.astype(cd),
                               preferred_element_type=jnp.float32)
    h = jnp.maximum(dot(state, w1) + b1, 0.0)
    h = jnp.maximum(dot(h, w2) + b2, 0.0)
    mean = dot(h, wm) + bm
    log_std = jnp.clip(dot(h, ws) + bs, -20.0, 2.0)
    return mean, jnp.exp(log_std)


if __name__ == "__main__":
    obs_dim, act_dim, batch = 16, 8, 8
    key = jax.random.PRNGKey(0)
    k_state, k_params = jax.random.split(key)

    state = jax.random.normal(k_state, (batch, obs_dim), jnp.float32)
    params = init_params(k_params, obs_dim, act_dim)

    # One-time packing (cast / concat / pad / mask) -- outside the hot path.
    packed, act_dim_p = pack_params(params)
    jax.block_until_ready(packed)

    # Small-batch path (single full-batch tile, grid=(1,)).
    mean, std = actor_forward(state, packed, act_dim_p)
    jax.block_until_ready((mean, std))
    mean_ref, std_ref = actor_forward_ref(state, params)
    assert mean.shape == (batch, act_dim) and std.shape == (batch, act_dim)
    assert jnp.allclose(mean, mean_ref, atol=2e-3, rtol=2e-3), "mean mismatch"
    assert jnp.allclose(std, std_ref, atol=2e-3, rtol=2e-3), "std mismatch"

    # Larger, non-multiple batch exercises >=2 grid steps and the partial
    # last block (no explicit padding anywhere).
    big_state = jax.random.normal(jax.random.PRNGKey(1), (300, obs_dim), jnp.float32)
    mean_b, std_b = actor_forward(big_state, packed, act_dim_p)
    jax.block_until_ready((mean_b, std_b))
    mean_b_ref, std_b_ref = actor_forward_ref(big_state, params)
    assert mean_b.shape == (300, act_dim) and std_b.shape == (300, act_dim)
    assert jnp.allclose(mean_b, mean_b_ref, atol=2e-3, rtol=2e-3), "mean mismatch (tiled)"
    assert jnp.allclose(std_b, std_b_ref, atol=2e-3, rtol=2e-3), "std mismatch (tiled)"

    # TODO(synk): Actor.sample() (rsample + tanh + log_prob) is stochastic and
    # outside forward(); it could be fused into this kernel with
    # pltpu.prng_seed/prng_random_bits to amortize launch overhead for tiny
    # inference batches, but only forward() is kernelized here.
    print("KERNEL_OK")
</pallas_src>

<mosaic_0001>
module attributes {stable_mosaic.version = 11 : i64} {
  func.func @actor_kernel(%arg0: i32, %arg1: memref<8x16xf32, #tpu.memory_space<vmem>>, %arg2: memref<16x256xbf16, #tpu.memory_space<vmem>>, %arg3: memref<1x256xf32, #tpu.memory_space<vmem>>, %arg4: memref<256x256xbf16, #tpu.memory_space<vmem>>, %arg5: memref<1x256xf32, #tpu.memory_space<vmem>>, %arg6: memref<256x128xbf16, #tpu.memory_space<vmem>>, %arg7: memref<1x128xf32, #tpu.memory_space<vmem>>, %arg8: memref<1x128xi32, #tpu.memory_space<vmem>>, %arg9: memref<8x128xf32, #tpu.memory_space<vmem>>) attributes {dimension_semantics = [#tpu.dimension_semantics<parallel>], iteration_bounds = array<i64: 1>, scalar_prefetch = 0 : i64, scratch_operands = 0 : i64, tpu.core_type = #tpu.core_type<tc>, window_params = [{transform_indices = @transform_0, window_bounds = array<i64: 8, 16>}, {pipeline_mode = #tpu.pipeline_mode<synchronous>, transform_indices = @transform_1, window_bounds = array<i64: 16, 256>}, {pipeline_mode = #tpu.pipeline_mode<synchronous>, transform_indices = @transform_2, window_bounds = array<i64: 1, 256>}, {pipeline_mode = #tpu.pipeline_mode<synchronous>, transform_indices = @transform_3, window_bounds = array<i64: 256, 256>}, {pipeline_mode = #tpu.pipeline_mode<synchronous>, transform_indices = @transform_4, window_bounds = array<i64: 1, 256>}, {pipeline_mode = #tpu.pipeline_mode<synchronous>, transform_indices = @transform_5, window_bounds = array<i64: 256, 128>}, {pipeline_mode = #tpu.pipeline_mode<synchronous>, transform_indices = @transform_6, window_bounds = array<i64: 1, 128>}, {pipeline_mode = #tpu.pipeline_mode<synchronous>, transform_indices = @transform_7, window_bounds = array<i64: 1, 128>}, {transform_indices = @transform_8, window_bounds = array<i64: 8, 128>}]} {
    %c0 = arith.constant 0 : index
    %c0_0 = arith.constant 0 : index
    %0 = vector.load %arg1[%c0, %c0_0] : memref<8x16xf32, #tpu.memory_space<vmem>>, vector<8x16xf32>
    %1 = arith.truncf %0 : vector<8x16xf32> to vector<8x16xbf16>
    %c0_1 = arith.constant 0 : index
    %c0_2 = arith.constant 0 : index
    %2 = vector.load %arg2[%c0_1, %c0_2] : memref<16x256xbf16, #tpu.memory_space<vmem>>, vector<16x256xbf16>
    %cst = arith.constant dense<0.000000e+00> : vector<8x256xf32>
    %3 = tpu.matmul %1, %2, %cst {dimension_numbers = #tpu.dot_dimension_numbers<[1], [0], [0], [1], [0, 0, 1, 1], [], []>} : vector<8x16xbf16>, vector<16x256xbf16>, vector<8x256xf32> -> vector<8x256xf32>
    %c0_3 = arith.constant 0 : index
    %c0_4 = arith.constant 0 : index
    %4 = vector.load %arg3[%c0_3, %c0_4] : memref<1x256xf32, #tpu.memory_space<vmem>>, vector<1x256xf32>
    %5 = vector.broadcast %4 : vector<1x256xf32> to vector<8x256xf32>
    %6 = arith.addf %3, %5 : vector<8x256xf32>
    %cst_5 = arith.constant 0.000000e+00 : f32
    %7 = vector.broadcast %cst_5 : f32 to vector<8x256xf32>
    %8 = arith.maximumf %6, %7 : vector<8x256xf32>
    %9 = arith.truncf %8 : vector<8x256xf32> to vector<8x256xbf16>
    %c0_6 = arith.constant 0 : index
    %c0_7 = arith.constant 0 : index
    %10 = vector.load %arg4[%c0_6, %c0_7] : memref<256x256xbf16, #tpu.memory_space<vmem>>, vector<256x256xbf16>
    %cst_8 = arith.constant dense<0.000000e+00> : vector<8x256xf32>
    %11 = tpu.matmul %9, %10, %cst_8 {dimension_numbers = #tpu.dot_dimension_numbers<[1], [0], [0], [1], [0, 0, 1, 1], [], []>} : vector<8x256xbf16>, vector<256x256xbf16>, vector<8x256xf32> -> vector<8x256xf32>
    %c0_9 = arith.constant 0 : index
    %c0_10 = arith.constant 0 : index
    %12 = vector.load %arg5[%c0_9, %c0_10] : memref<1x256xf32, #tpu.memory_space<vmem>>, vector<1x256xf32>
    %13 = vector.broadcast %12 : vector<1x256xf32> to vector<8x256xf32>
    %14 = arith.addf %11, %13 : vector<8x256xf32>
    %cst_11 = arith.constant 0.000000e+00 : f32
    %15 = vector.broadcast %cst_11 : f32 to vector<8x256xf32>
    %16 = arith.maximumf %14, %15 : vector<8x256xf32>
    %17 = arith.truncf %16 : vector<8x256xf32> to vector<8x256xbf16>
    %c0_12 = arith.constant 0 : index
    %c0_13 = arith.constant 0 : index
    %18 = vector.load %arg6[%c0_12, %c0_13] : memref<256x128xbf16, #tpu.memory_space<vmem>>, vector<256x128xbf16>
    %cst_14 = arith.constant dense<0.000000e+00> : vector<8x128xf32>
    %19 = tpu.matmul %17, %18, %cst_14 {dimension_numbers = #tpu.dot_dimension_numbers<[1], [0], [0], [1], [0, 0, 1, 1], [], []>} : vector<8x256xbf16>, vector<256x128xbf16>, vector<8x128xf32> -> vector<8x128xf32>
    %c0_15 = arith.constant 0 : index
    %c0_16 = arith.constant 0 : index
    %20 = vector.load %arg7[%c0_15, %c0_16] : memref<1x128xf32, #tpu.memory_space<vmem>>, vector<1x128xf32>
    %21 = vector.broadcast %20 : vector<1x128xf32> to vector<8x128xf32>
    %22 = arith.addf %19, %21 : vector<8x128xf32>
    %cst_17 = arith.constant -2.000000e+01 : f32
    %cst_18 = arith.constant 2.000000e+00 : f32
    %23 = vector.broadcast %cst_17 : f32 to vector<8x128xf32>
    %24 = arith.maximumf %23, %22 : vector<8x128xf32>
    %25 = vector.broadcast %cst_18 : f32 to vector<8x128xf32>
    %26 = arith.minimumf %25, %24 : vector<8x128xf32>
    %27 = math.exp %26 : vector<8x128xf32>
    %c0_19 = arith.constant 0 : index
    %c0_20 = arith.constant 0 : index
    %28 = vector.load %arg8[%c0_19, %c0_20] : memref<1x128xi32, #tpu.memory_space<vmem>>, vector<1x128xi32>
    %c0_i32 = arith.constant 0 : i32
    %29 = vector.broadcast %c0_i32 : i32 to vector<1x128xi32>
    %30 = arith.cmpi ne, %28, %29 : vector<1x128xi32>
    %31 = vector.shape_cast %30 : vector<1x128xi1> to vector<1x128xi1>
    %32 = vector.broadcast %31 : vector<1x128xi1> to vector<8x128xi1>
    %33 = arith.select %32, %27, %22 : vector<8x128xi1>, vector<8x128xf32>
    %c0_21 = arith.constant 0 : index
    %c0_22 = arith.constant 0 : index
    %34 = vector.load %arg9[%c0_21, %c0_22] : memref<8x128xf32, #tpu.memory_space<vmem>>, vector<8x128xf32>
    tpu.vector_store %arg9[%c0_21, %c0_22], %33 {strides = array<i32>} : memref<8x128xf32, #tpu.memory_space<vmem>>, vector<8x128xf32>,
    return
  }
  func.func @transform_0(%arg0: i32) -> (i32, i32) {
    %c0_i32 = arith.constant 0 : i32
    %c0_i32_0 = arith.constant 0 : i32
    return %arg0, %c0_i32 : i32, i32
  }
  func.func @transform_1(%arg0: i32) -> (i32, i32) {
    %c0_i32 = arith.constant 0 : i32
    %c0_i32_0 = arith.constant 0 : i32
    %c0_i32_1 = arith.constant 0 : i32
    return %c0_i32, %c0_i32_0 : i32, i32
  }
  func.func @transform_2(%arg0: i32) -> (i32, i32) {
    %c0_i32 = arith.constant 0 : i32
    %c0_i32_0 = arith.constant 0 : i32
    %c0_i32_1 = arith.constant 0 : i32
    return %c0_i32, %c0_i32_0 : i32, i32
  }
  func.func @transform_3(%arg0: i32) -> (i32, i32) {
    %c0_i32 = arith.constant 0 : i32
    %c0_i32_0 = arith.constant 0 : i32
    %c0_i32_1 = arith.constant 0 : i32
    return %c0_i32, %c0_i32_0 : i32, i32
  }
  func.func @transform_4(%arg0: i32) -> (i32, i32) {
    %c0_i32 = arith.constant 0 : i32
    %c0_i32_0 = arith.constant 0 : i32
    %c0_i32_1 = arith.constant 0 : i32
    return %c0_i32, %c0_i32_0 : i32, i32
  }
  func.func @transform_5(%arg0: i32) -> (i32, i32) {
    %c0_i32 = arith.constant 0 : i32
    %c0_i32_0 = arith.constant 0 : i32
    %c0_i32_1 = arith.constant 0 : i32
    return %c0_i32, %c0_i32_0 : i32, i32
  }
  func.func @transform_6(%arg0: i32) -> (i32, i32) {
    %c0_i32 = arith.constant 0 : i32
    %c0_i32_0 = arith.constant 0 : i32
    %c0_i32_1 = arith.constant 0 : i32
    return %c0_i32, %c0_i32_0 : i32, i32
  }
  func.func @transform_7(%arg0: i32) -> (i32, i32) {
    %c0_i32 = arith.constant 0 : i32
    %c0_i32_0 = arith.constant 0 : i32
    %c0_i32_1 = arith.constant 0 : i32
    return %c0_i32, %c0_i32_0 : i32, i32
  }
  func.func @transform_8(%arg0: i32) -> (i32, i32) {
    %c0_i32 = arith.constant 0 : i32
    %c0_i32_0 = arith.constant 0 : i32
    return %arg0, %c0_i32 : i32, i32
  }
}

</mosaic_0001>

<llo_original>
// kernel: tpu_custom_call.1
$region0: #{tpu_custom_call.1}
  #allocation0 [shape = 'u32[]', space=smem, size = 0x4, offset = 0x4, fixed_abs, tag = 'smem constant byte address 0x4 - core index']
  #allocation1 [shape = 'u32[144,128]{1,0:T(1,128)}', space=vmem, size = 0x12000, scoped, tag = 'internal scratch']
  %s0 = inlined_call_operand.hbm [shape: f32[8,16], index: 0, kind: input, shape index: {}]
  %s1 = inlined_call_operand.hbm [shape: bf16[16,256], index: 1, kind: input, shape index: {}]
  %s2 = inlined_call_operand.vmem [shape: f32[1,256], index: 2, kind: input, shape index: {}]
  %s3 = inlined_call_operand.hbm [shape: bf16[256,256], index: 3, kind: input, shape index: {}]
  %s4 = inlined_call_operand.vmem [shape: f32[1,256], index: 4, kind: input, shape index: {}]
  %s5 = inlined_call_operand.hbm [shape: bf16[256,128], index: 5, kind: input, shape index: {}]
  %s6 = inlined_call_operand.vmem [shape: f32[1,128], index: 6, kind: input, shape index: {}]
  %s7 = inlined_call_operand.vmem [shape: s32[1,128], index: 7, kind: input, shape index: {}]
  %s8 = inlined_call_operand.hbm [shape: f32[8,128], index: 8, kind: output, shape index: {}]
  %s9 = sld [smem:[#allocation0]]
  $region58: #{tpu_custom_call.1} parent=0
    _
  %s11 = ssub.s32 1, %s9
  %s12 = scalar_select 0, %s11, %s9
  $region1: #{tpu_custom_call.1} parent=0
    #allocation2 [shape = 'u8[4096]{0}', space=vmem, size = 0x1000, scoped, tag = 'input window, operand 0, single buffered']
    #allocation3 [shape = 's32[1]{0}', space=sflag, size = 0x4, scoped, tag = 'scoped memory for tpu_custom_call.1']
    #allocation4 [shape = 's32[1]{0}', space=sflag, size = 0x4, scoped, tag = 'scoped memory for tpu_custom_call.1']
    #allocation5 [shape = 'u8[8192]{0}', space=vmem, size = 0x2000, scoped, tag = 'input window, operand 1, single buffered']
    #allocation6 [shape = 's32[1]{0}', space=sflag, size = 0x4, scoped, tag = 'scoped memory for tpu_custom_call.1']
    #allocation7 [shape = 'u8[131072]{0}', space=vmem, size = 0x20000, scoped, tag = 'input window, operand 3, single buffered']
    #allocation8 [shape = 'u8[65536]{0}', space=vmem, size = 0x10000, scoped, tag = 'input window, operand 5, single buffered']
    #allocation9 [shape = 's32[1]{0}', space=sflag, size = 0x4, scoped, tag = 'scoped memory for tpu_custom_call.1']
    #allocation10 [shape = 'u8[4096]{0}', space=vmem, size = 0x1000, scoped, tag = 'output window, operand 0, single buffered']
    %13 = vsyncpa [#allocation3], 0
    %14 = vsyncpa [#allocation6], 0
    %15 = vsyncpa [#allocation9], 0
    %16 = vsyncpa [#allocation4], 0
    // Predicated region
    $region2: #{tpu_custom_call.1} parent=1 // pred_check
      _
    $region3: #{tpu_custom_call.1} parent=1 // pred_check_branch
      %18 = sbr.rel (0) target = $region5
    $region4: #{tpu_custom_call.1} parent=1 // pred_region
      %s20 = ssub.s32 128, 128
      %21 = vsyncadd [#allocation3], %s20
      %s23 = sshll.u32 [#allocation2], 4
      %s24 = int_to_ptr.vmem [resolvable:$true] %s23
      %26 = dma.hbm_to_vmem [thread:$0]  %s0, 128, %s24, [#allocation3]
    $region5: #{tpu_custom_call.1} parent=1 // pred_fallthru
      _
    // Predicated region
    $region6: #{tpu_custom_call.1} parent=1 // pred_check
      _
    $region7: #{tpu_custom_call.1} parent=1 // pred_check_branch
      %28 = sbr.rel (0) target = $region9
    $region8: #{tpu_custom_call.1} parent=1 // pred_region
      %s30 = ssub.s32 256, 256
      %31 = vsyncadd [#allocation6], %s30
      %s32 = sshll.u32 [#allocation5], 4
      %s33 = int_to_ptr.vmem [resolvable:$true] %s32
      %38 = dma.hbm_to_vmem [thread:$0]  %s1, 256, %s33, [#allocation6], 128, 128, 8
    $region9: #{tpu_custom_call.1} parent=1 // pred_fallthru
      _
    // Predicated region
    $region10: #{tpu_custom_call.1} parent=1 // pred_check
      _
    $region11: #{tpu_custom_call.1} parent=1 // pred_check_branch
      %40 = sbr.rel (0) target = $region13
    $region12: #{tpu_custom_call.1} parent=1 // pred_region
      _
    $region13: #{tpu_custom_call.1} parent=1 // pred_fallthru
      _
    // Predicated region
    $region14: #{tpu_custom_call.1} parent=1 // pred_check
      _
    $region15: #{tpu_custom_call.1} parent=1 // pred_check_branch
      %42 = sbr.rel (0) target = $region17
    $region16: #{tpu_custom_call.1} parent=1 // pred_region
      %s44 = ssub.s32 4096, 4096
      %45 = vsyncadd [#allocation6], %s44
      %s46 = sshll.u32 [#allocation7], 4
      %s47 = int_to_ptr.vmem [resolvable:$true] %s46
      %52 = dma.hbm_to_vmem [thread:$0]  %s3, 4096, %s47, [#allocation6], 128, 128, 8
    $region17: #{tpu_custom_call.1} parent=1 // pred_fallthru
      _
    // Predicated region
    $region18: #{tpu_custom_call.1} parent=1 // pred_check
      _
    $region19: #{tpu_custom_call.1} parent=1 // pred_check_branch
      %54 = sbr.rel (0) target = $region21
    $region20: #{tpu_custom_call.1} parent=1 // pred_region
      _
    $region21: #{tpu_custom_call.1} parent=1 // pred_fallthru
      _
    // Predicated region
    $region22: #{tpu_custom_call.1} parent=1 // pred_check
      _
    $region23: #{tpu_custom_call.1} parent=1 // pred_check_branch
      %56 = sbr.rel (0) target = $region25
    $region24: #{tpu_custom_call.1} parent=1 // pred_region
      %s58 = ssub.s32 2048, 2048
      %59 = vsyncadd [#allocation9], %s58
      %s60 = sshll.u32 [#allocation8], 4
      %s61 = int_to_ptr.vmem [resolvable:$true] %s60
      %66 = dma.hbm_to_vmem [thread:$0]  %s5, 2048, %s61, [#allocation9], 64, 64, 4
    $region25: #{tpu_custom_call.1} parent=1 // pred_fallthru
      _
    // Predicated region
    $region26: #{tpu_custom_call.1} parent=1 // pred_check
      _
    $region27: #{tpu_custom_call.1} parent=1 // pred_check_branch
      %68 = sbr.rel (0) target = $region29
    $region28: #{tpu_custom_call.1} parent=1 // pred_region
      _
    $region29: #{tpu_custom_call.1} parent=1 // pred_fallthru
      _
    // Predicated region
    $region30: #{tpu_custom_call.1} parent=1 // pred_check
      _
    $region31: #{tpu_custom_call.1} parent=1 // pred_check_branch
      %70 = sbr.rel (0) target = $region33
    $region32: #{tpu_custom_call.1} parent=1 // pred_region
      _
    $region33: #{tpu_custom_call.1} parent=1 // pred_fallthru
      _
    // Predicated region
    $region34: #{tpu_custom_call.1} parent=1 // pred_check
      _
    $region35: #{tpu_custom_call.1} parent=1 // pred_check_branch
      %72 = sbr.rel (0) target = $region37
    $region36: #{tpu_custom_call.1} parent=1 // pred_region
      %73 = dma.done [#allocation3], 128
    $region37: #{tpu_custom_call.1} parent=1 // pred_fallthru
      _
    // Predicated region
    $region38: #{tpu_custom_call.1} parent=1 // pred_check
      _
    $region39: #{tpu_custom_call.1} parent=1 // pred_check_branch
      %75 = sbr.rel (0) target = $region41
    $region40: #{tpu_custom_call.1} parent=1 // pred_region
      %76 = dma.done [#allocation6], 256
    $region41: #{tpu_custom_call.1} parent=1 // pred_fallthru
      _
    // Predicated region
    $region42: #{tpu_custom_call.1} parent=1 // pred_check
      _
    $region43: #{tpu_custom_call.1} parent=1 // pred_check_branch
      %78 = sbr.rel (0) target = $region45
    $region44: #{tpu_custom_call.1} parent=1 // pred_region
      %79 = dma.done [#allocation6], 4096
    $region45: #{tpu_custom_call.1} parent=1 // pred_fallthru
      _
    // Predicated region
    $region46: #{tpu_custom_call.1} parent=1 // pred_check
      _
    $region47: #{tpu_custom_call.1} parent=1 // pred_check_branch
      %81 = sbr.rel (0) target = $region49
    $region48: #{tpu_custom_call.1} parent=1 // pred_region
      %82 = dma.done [#allocation9], 2048
    $region49: #{tpu_custom_call.1} parent=1 // pred_fallthru
      _
    %v84 = vld [vmem:[#allocation2] sm:$0xff]
    %v85 = vpack.c.bf16 %v84, %v84
    %v86 = vld [vmem:[#allocation5] sm:$0xff]
    %v87 = vld [vmem:[#allocation5 + $0x8] sm:$0xff]
    %v88 = vld [vmem:[%s2] sm:$0x3]
    %v90 = vlaneseq
    %v91 = vshrl.u32 %v90, 7
    %v92 = vsub.s32 0, %v91
    %v93 = vrot.slane %v88, %v92
    %v94 = vlaneseq
    %v95 = vshrl.u32 %v94, 7
    %v96 = vsub.s32 1, %v95
    %v97 = vrot.slane %v88, %v96
    %v102 = vunpack.c.l.b16 %v86
    %v103 = vunpack.c.h.b16 %v86
    %v104 = vunpack.c.l.b16 %v87
    %v105 = vunpack.c.h.b16 %v87
    %v106 = vpack.c.b16 %v104, %v102
    %v107 = vpack.c.b16 %v105, %v103
    %vm110 = vcmask 130048
    %v112 = vsel %vm110, %v85, 0
    %114 = vmatprep.subr.bf16.mxu0 %v107
    %115 = vmatpush1.bf16.msra.mxu0 %v106
    %116 = vmatprep.subr.bf16.mxu0 0
    %117 = vmatpush1.bf16.msra.mxu0 0
    %118 = vmatprep.subr.bf16.mxu0 0
    %119 = vmatpush1.bf16.msra.mxu0 0
    %120 = vmatprep.subr.bf16.mxu0 0
    %121 = vmatpush1.bf16.msra.mxu0 0
    %122 = vmatprep.subr.bf16.mxu0 0
    %123 = vmatpush1.bf16.msra.mxu0 0
    %124 = vmatprep.subr.bf16.mxu0 0
    %125 = vmatpush1.bf16.msra.mxu0 0
    %126 = vmatprep.subr.bf16.mxu0 0
    %127 = vmatpush1.bf16.msra.mxu0 0
    %128 = vmatprep.subr.bf16.mxu0 0
    %129 = vmatpush1.bf16.msra.mxu0 0
    %130 = vmatprep.subr.bf16.mxu0 0
    %131 = vmatpush1.bf16.msra.mxu0 0
    %132 = vmatprep.subr.bf16.mxu0 0
    %133 = vmatpush1.bf16.msra.mxu0 0
    %134 = vmatprep.subr.bf16.mxu0 0
    %135 = vmatpush1.bf16.msra.mxu0 0
    %136 = vmatprep.subr.bf16.mxu0 0
    %137 = vmatpush1.bf16.msra.mxu0 0
    %138 = vmatprep.subr.bf16.mxu0 0
    %139 = vmatpush1.bf16.msra.mxu0 0
    %140 = vmatprep.subr.bf16.mxu0 0
    %141 = vmatpush1.bf16.msra.mxu0 0
    %142 = vmatprep.subr.bf16.mxu0 0
    %143 = vmatpush1.bf16.msra.mxu0 0
    %144 = vmatprep.subr.bf16.mxu0 0
    %145 = vmatpush1.bf16.msra.mxu0 0
    %146 = vmatprep.mubr.bf16.mxu0 0
    %147 = vmatmul.mubr.bf16.gmra.mrb[0].mxu0 %v112
    %v148 = vpop.f32.mrb[0].mxu0
    %v149 = vadd.f32 %v93, %v148
    %v150 = vpop.f32.mrb[0].mxu0
    %v151 = vadd.f32 %v97, %v150
    %v152 = vpop.f32.mrb[0].mxu0
    %v153 = vpop.f32.mrb[0].mxu0
    %154 = vdwg.mxu0
    %v155 = vmax.f32 %v149, 0.0
    %v156 = vmax.f32 %v151, 0.0
    %v157 = vpack.c.bf16 %v155, %v155
    %v158 = vpack.c.bf16 %v156, %v156
    %v159 = vld [vmem:[#allocation7] sm:$0xff]
    %v160 = vld [vmem:[#allocation7 + $0x8] sm:$0xff]
    %v161 = vld [vmem:[#allocation7 + $0x10] sm:$0xff]
    %v162 = vld [vmem:[#allocation7 + $0x18] sm:$0xff]
    %v163 = vld [vmem:[#allocation7 + $0x20] sm:$0xff]
    %v164 = vld [vmem:[#allocation7 + $0x28] sm:$0xff]
    %v165 = vld [vmem:[#allocation7 + $0x30] sm:$0xff]
    %v166 = vld [vmem:[#allocation7 + $0x38] sm:$0xff]
    %v167 = vld [vmem:[#allocation7 + $0x40] sm:$0xff]
    %v168 = vld [vmem:[#allocation7 + $0x48] sm:$0xff]
    %v169 = vld [vmem:[#allocation7 + $0x50] sm:$0xff]
    %v170 = vld [vmem:[#allocation7 + $0x58] sm:$0xff]
    %v171 = vld [vmem:[#allocation7 + $0x60] sm:$0xff]
    %v172 = vld [vmem:[#allocation7 + $0x68] sm:$0xff]
    %v173 = vld [vmem:[#allocation7 + $0x70] sm:$0xff]
    %v174 = vld [vmem:[#allocation7 + $0x78] sm:$0xff]
    %v175 = vld [vmem:[#allocation7 + $0x80] sm:$0xff]
    %v176 = vld [vmem:[#allocation7 + $0x88] sm:$0xff]
    %v177 = vld [vmem:[#allocation7 + $0x90] sm:$0xff]
    %v178 = vld [vmem:[#allocation7 + $0x98] sm:$0xff]
    %v179 = vld [vmem:[#allocation7 + $0xa0] sm:$0xff]
    %v180 = vld [vmem:[#allocation7 + $0xa8] sm:$0xff]
    %v181 = vld [vmem:[#allocation7 + $0xb0] sm:$0xff]
    %v182 = vld [vmem:[#allocation7 + $0xb8] sm:$0xff]
    %v183 = vld [vmem:[#allocation7 + $0xc0] sm:$0xff]
    %v184 = vld [vmem:[#allocation7 + $0xc8] sm:$0xff]
    %v185 = vld [vmem:[#allocation7 + $0xd0] sm:$0xff]
    %v186 = vld [vmem:[#allocation7 + $0xd8] sm:$0xff]
    %v187 = vld [vmem:[#allocation7 + $0xe0] sm:$0xff]
    %v188 = vld [vmem:[#allocation7 + $0xe8] sm:$0xff]
    %v189 = vld [vmem:[#allocation7 + $0xf0] sm:$0xff]
    %v190 = vld [vmem:[#allocation7 + $0xf8] sm:$0xff]
    %v191 = vld [vmem:[%s4] sm:$0x3]
    %v193 = vlaneseq
    %v194 = vshrl.u32 %v193, 7
    %v195 = vsub.s32 0, %v194
    %v196 = vrot.slane %v191, %v195
    %v197 = vlaneseq
    %v198 = vshrl.u32 %v197, 7
    %v199 = vsub.s32 1, %v198
    %v200 = vrot.slane %v191, %v199
    %v235 = vunpack.c.l.b16 %v159
    %v236 = vunpack.c.h.b16 %v159
    %v237 = vunpack.c.l.b16 %v160
    %v238 = vunpack.c.h.b16 %v160
    %v239 = vunpack.c.l.b16 %v161
    %v240 = vunpack.c.h.b16 %v161
    %v241 = vunpack.c.l.b16 %v162
    %v242 = vunpack.c.h.b16 %v162
    %v243 = vunpack.c.l.b16 %v163
    %v244 = vunpack.c.h.b16 %v163
    %v245 = vunpack.c.l.b16 %v164
    %v246 = vunpack.c.h.b16 %v164
    %v247 = vunpack.c.l.b16 %v165
    %v248 = vunpack.c.h.b16 %v165
    %v249 = vunpack.c.l.b16 %v166
    %v250 = vunpack.c.h.b16 %v166
    %v251 = vunpack.c.l.b16 %v167
    %v252 = vunpack.c.h.b16 %v167
    %v253 = vunpack.c.l.b16 %v168
    %v254 = vunpack.c.h.b16 %v168
    %v255 = vunpack.c.l.b16 %v169
    %v256 = vunpack.c.h.b16 %v169
    %v257 = vunpack.c.l.b16 %v170
    %v258 = vunpack.c.h.b16 %v170
    %v259 = vunpack.c.l.b16 %v171
    %v260 = vunpack.c.h.b16 %v171
    %v261 = vunpack.c.l.b16 %v172
    %v262 = vunpack.c.h.b16 %v172
    %v263 = vunpack.c.l.b16 %v173
    %v264 = vunpack.c.h.b16 %v173
    %v265 = vunpack.c.l.b16 %v174
    %v266 = vunpack.c.h.b16 %v174
    %v267 = vunpack.c.l.b16 %v175
    %v268 = vunpack.c.h.b16 %v175
    %v269 = vunpack.c.l.b16 %v176
    %v270 = vunpack.c.h.b16 %v176
    %v271 = vunpack.c.l.b16 %v177
    %v272 = vunpack.c.h.b16 %v177
    %v273 = vunpack.c.l.b16 %v178
    %v274 = vunpack.c.h.b16 %v178
    %v275 = vunpack.c.l.b16 %v179
    %v276 = vunpack.c.h.b16 %v179
    %v277 = vunpack.c.l.b16 %v180
    %v278 = vunpack.c.h.b16 %v180
    %v279 = vunpack.c.l.b16 %v181
    %v280 = vunpack.c.h.b16 %v181
    %v281 = vunpack.c.l.b16 %v182
    %v282 = vunpack.c.h.b16 %v182
    %v283 = vunpack.c.l.b16 %v183
    %v284 = vunpack.c.h.b16 %v183
    %v285 = vunpack.c.l.b16 %v184
    %v286 = vunpack.c.h.b16 %v184
    %v287 = vunpack.c.l.b16 %v185
    %v288 = vunpack.c.h.b16 %v185
    %v289 = vunpack.c.l.b16 %v186
    %v290 = vunpack.c.h.b16 %v186
    %v291 = vunpack.c.l.b16 %v187
    %v292 = vunpack.c.h.b16 %v187
    %v293 = vunpack.c.l.b16 %v188
    %v294 = vunpack.c.h.b16 %v188
    %v295 = vunpack.c.l.b16 %v189
    %v296 = vunpack.c.h.b16 %v189
    %v297 = vunpack.c.l.b16 %v190
    %v298 = vunpack.c.h.b16 %v190
    %v299 = vpack.c.b16 %v237, %v235
    %v300 = vpack.c.b16 %v238, %v236
    %v301 = vpack.c.b16 %v241, %v239
    %v302 = vpack.c.b16 %v242, %v240
    %v303 = vpack.c.b16 %v245, %v243
    %v304 = vpack.c.b16 %v246, %v244
    %v305 = vpack.c.b16 %v249, %v247
    %v306 = vpack.c.b16 %v250, %v248
    %v307 = vpack.c.b16 %v253, %v251
    %v308 = vpack.c.b16 %v254, %v252
    %v309 = vpack.c.b16 %v257, %v255
    %v310 = vpack.c.b16 %v258, %v256
    %v311 = vpack.c.b16 %v261, %v259
    %v312 = vpack.c.b16 %v262, %v260
    %v313 = vpack.c.b16 %v265, %v263
    %v314 = vpack.c.b16 %v266, %v264
    %v315 = vpack.c.b16 %v269, %v267
    %v316 = vpack.c.b16 %v270, %v268
    %v317 = vpack.c.b16 %v273, %v271
    %v318 = vpack.c.b16 %v274, %v272
    %v319 = vpack.c.b16 %v277, %v275
    %v320 = vpack.c.b16 %v278, %v276
    %v321 = vpack.c.b16 %v281, %v279
    %v322 = vpack.c.b16 %v282, %v280
    %v323 = vpack.c.b16 %v285, %v283
    %v324 = vpack.c.b16 %v286, %v284
    %v325 = vpack.c.b16 %v289, %v287
    %v326 = vpack.c.b16 %v290, %v288
    %v327 = vpack.c.b16 %v293, %v291
    %v328 = vpack.c.b16 %v294, %v292
    %v329 = vpack.c.b16 %v297, %v295
    %v330 = vpack.c.b16 %v298, %v296
    %363 = vmatprep.subr.bf16.mxu0 %v300
    %364 = vmatpush1.bf16.msra.mxu0 %v299
    %365 = vmatprep.subr.bf16.mxu0 %v302
    %366 = vmatpush1.bf16.msra.mxu0 %v301
    %367 = vmatprep.subr.bf16.mxu0 %v304
    %368 = vmatpush1.bf16.msra.mxu0 %v303
    %369 = vmatprep.subr.bf16.mxu0 %v306
    %370 = vmatpush1.bf16.msra.mxu0 %v305
    %371 = vmatprep.subr.bf16.mxu0 %v308
    %372 = vmatpush1.bf16.msra.mxu0 %v307
    %373 = vmatprep.subr.bf16.mxu0 %v310
    %374 = vmatpush1.bf16.msra.mxu0 %v309
    %375 = vmatprep.subr.bf16.mxu0 %v312
    %376 = vmatpush1.bf16.msra.mxu0 %v311
    %377 = vmatprep.subr.bf16.mxu0 %v314
    %378 = vmatpush1.bf16.msra.mxu0 %v313
    %379 = vmatprep.subr.bf16.mxu0 %v316
    %380 = vmatpush1.bf16.msra.mxu0 %v315
    %381 = vmatprep.subr.bf16.mxu0 %v318
    %382 = vmatpush1.bf16.msra.mxu0 %v317
    %383 = vmatprep.subr.bf16.mxu0 %v320
    %384 = vmatpush1.bf16.msra.mxu0 %v319
    %385 = vmatprep.subr.bf16.mxu0 %v322
    %386 = vmatpush1.bf16.msra.mxu0 %v321
    %387 = vmatprep.subr.bf16.mxu0 %v324
    %388 = vmatpush1.bf16.msra.mxu0 %v323
    %389 = vmatprep.subr.bf16.mxu0 %v326
    %390 = vmatpush1.bf16.msra.mxu0 %v325
    %391 = vmatprep.subr.bf16.mxu0 %v328
    %392 = vmatpush1.bf16.msra.mxu0 %v327
    %393 = vmatprep.subr.bf16.mxu0 %v330
    %394 = vmatpush1.bf16.msra.mxu0 %v329
    %395 = vmatprep.mubr.bf16.mxu0 %v158
    %396 = vmatmul.mubr.bf16.gmra.mrb[0].mxu0 %v157
    %v397 = vpop.f32.mrb[0].mxu0
    %v398 = vadd.f32 %v196, %v397
    %v399 = vpop.f32.mrb[0].mxu0
    %v400 = vadd.f32 %v200, %v399
    %v401 = vpop.f32.mrb[0].mxu0
    %v402 = vpop.f32.mrb[0].mxu0
    %403 = vdwg.mxu0
    %v404 = vmax.f32 %v398, 0.0
    %v405 = vmax.f32 %v400, 0.0
    %v406 = vpack.c.bf16 %v404, %v404
    %v407 = vpack.c.bf16 %v405, %v405
    %v408 = vld [vmem:[#allocation8] sm:$0xf]
    %v409 = vld [vmem:[#allocation8 + $0x4] sm:$0xf]
    %v410 = vld [vmem:[#allocation8 + $0x8] sm:$0xf]
    %v411 = vld [vmem:[#allocation8 + $0xc] sm:$0xf]
    %v412 = vld [vmem:[#allocation8 + $0x10] sm:$0xf]
    %v413 = vld [vmem:[#allocation8 + $0x14] sm:$0xf]
    %v414 = vld [vmem:[#allocation8 + $0x18] sm:$0xf]
    %v415 = vld [vmem:[#allocation8 + $0x1c] sm:$0xf]
    %v416 = vld [vmem:[#allocation8 + $0x20] sm:$0xf]
    %v417 = vld [vmem:[#allocation8 + $0x24] sm:$0xf]
    %v418 = vld [vmem:[#allocation8 + $0x28] sm:$0xf]
    %v419 = vld [vmem:[#allocation8 + $0x2c] sm:$0xf]
    %v420 = vld [vmem:[#allocation8 + $0x30] sm:$0xf]
    %v421 = vld [vmem:[#allocation8 + $0x34] sm:$0xf]
    %v422 = vld [vmem:[#allocation8 + $0x38] sm:$0xf]
    %v423 = vld [vmem:[#allocation8 + $0x3c] sm:$0xf]
    %v424 = vld [vmem:[#allocation8 + $0x40] sm:$0xf]
    %v425 = vld [vmem:[#allocation8 + $0x44] sm:$0xf]
    %v426 = vld [vmem:[#allocation8 + $0x48] sm:$0xf]
    %v427 = vld [vmem:[#allocation8 + $0x4c] sm:$0xf]
    %v428 = vld [vmem:[#allocation8 + $0x50] sm:$0xf]
    %v429 = vld [vmem:[#allocation8 + $0x54] sm:$0xf]
    %v430 = vld [vmem:[#allocation8 + $0x58] sm:$0xf]
    %v431 = vld [vmem:[#allocation8 + $0x5c] sm:$0xf]
    %v432 = vld [vmem:[#allocation8 + $0x60] sm:$0xf]
    %v433 = vld [vmem:[#allocation8 + $0x64] sm:$0xf]
    %v434 = vld [vmem:[#allocation8 + $0x68] sm:$0xf]
    %v435 = vld [vmem:[#allocation8 + $0x6c] sm:$0xf]
    %v436 = vld [vmem:[#allocation8 + $0x70] sm:$0xf]
    %v437 = vld [vmem:[#allocation8 + $0x74] sm:$0xf]
    %v438 = vld [vmem:[#allocation8 + $0x78] sm:$0xf]
    %v439 = vld [vmem:[#allocation8 + $0x7c] sm:$0xf]
    %v440 = vld [vmem:[%s6] sm:$0x1]
    %v442 = vlaneseq
    %v443 = vshrl.u32 %v442, 7
    %v444 = vsub.s32 0, %v443
    %v445 = vrot.slane %v440, %v444
    %v479 = vunpack.c.l.b16 %v408
    %v480 = vunpack.c.l.b16 %v409
    %v481 = vunpack.c.l.b16 %v410
    %v482 = vunpack.c.l.b16 %v411
    %v483 = vunpack.c.l.b16 %v412
    %v484 = vunpack.c.l.b16 %v413
    %v485 = vunpack.c.l.b16 %v414
    %v486 = vunpack.c.l.b16 %v415
    %v487 = vunpack.c.l.b16 %v416
    %v488 = vunpack.c.l.b16 %v417
    %v489 = vunpack.c.l.b16 %v418
    %v490 = vunpack.c.l.b16 %v419
    %v491 = vunpack.c.l.b16 %v420
    %v492 = vunpack.c.l.b16 %v421
    %v493 = vunpack.c.l.b16 %v422
    %v494 = vunpack.c.l.b16 %v423
    %v495 = vunpack.c.l.b16 %v424
    %v496 = vunpack.c.l.b16 %v425
    %v497 = vunpack.c.l.b16 %v426
    %v498 = vunpack.c.l.b16 %v427
    %v499 = vunpack.c.l.b16 %v428
    %v500 = vunpack.c.l.b16 %v429
    %v501 = vunpack.c.l.b16 %v430
    %v502 = vunpack.c.l.b16 %v431
    %v503 = vunpack.c.l.b16 %v432
    %v504 = vunpack.c.l.b16 %v433
    %v505 = vunpack.c.l.b16 %v434
    %v506 = vunpack.c.l.b16 %v435
    %v507 = vunpack.c.l.b16 %v436
    %v508 = vunpack.c.l.b16 %v437
    %v509 = vunpack.c.l.b16 %v438
    %v510 = vunpack.c.l.b16 %v439
    %v511 = vpack.c.b16 %v480, %v479
    %v512 = vpack.c.b16 %v482, %v481
    %v513 = vpack.c.b16 %v484, %v483
    %v514 = vpack.c.b16 %v486, %v485
    %v515 = vpack.c.b16 %v488, %v487
    %v516 = vpack.c.b16 %v490, %v489
    %v517 = vpack.c.b16 %v492, %v491
    %v518 = vpack.c.b16 %v494, %v493
    %v519 = vpack.c.b16 %v496, %v495
    %v520 = vpack.c.b16 %v498, %v497
    %v521 = vpack.c.b16 %v500, %v499
    %v522 = vpack.c.b16 %v502, %v501
    %v523 = vpack.c.b16 %v504, %v503
    %v524 = vpack.c.b16 %v506, %v505
    %v525 = vpack.c.b16 %v508, %v507
    %v526 = vpack.c.b16 %v510, %v509
    %543 = vmatprep.subr.bf16.mxu0 0
    %544 = vmatpush1.bf16.msra.mxu0 %v511
    %545 = vmatprep.subr.bf16.mxu0 0
    %546 = vmatpush1.bf16.msra.mxu0 %v512
    %547 = vmatprep.subr.bf16.mxu0 0
    %548 = vmatpush1.bf16.msra.mxu0 %v513
    %549 = vmatprep.subr.bf16.mxu0 0
    %550 = vmatpush1.bf16.msra.mxu0 %v514
    %551 = vmatprep.subr.bf16.mxu0 0
    %552 = vmatpush1.bf16.msra.mxu0 %v515
    %553 = vmatprep.subr.bf16.mxu0 0
    %554 = vmatpush1.bf16.msra.mxu0 %v516
    %555 = vmatprep.subr.bf16.mxu0 0
    %556 = vmatpush1.bf16.msra.mxu0 %v517
    %557 = vmatprep.subr.bf16.mxu0 0
    %558 = vmatpush1.bf16.msra.mxu0 %v518
    %559 = vmatprep.subr.bf16.mxu0 0
    %560 = vmatpush1.bf16.msra.mxu0 %v519
    %561 = vmatprep.subr.bf16.mxu0 0
    %562 = vmatpush1.bf16.msra.mxu0 %v520
    %563 = vmatprep.subr.bf16.mxu0 0
    %564 = vmatpush1.bf16.msra.mxu0 %v521
    %565 = vmatprep.subr.bf16.mxu0 0
    %566 = vmatpush1.bf16.msra.mxu0 %v522
    %567 = vmatprep.subr.bf16.mxu0 0
    %568 = vmatpush1.bf16.msra.mxu0 %v523
    %569 = vmatprep.subr.bf16.mxu0 0
    %570 = vmatpush1.bf16.msra.mxu0 %v524
    %571 = vmatprep.subr.bf16.mxu0 0
    %572 = vmatpush1.bf16.msra.mxu0 %v525
    %573 = vmatprep.subr.bf16.mxu0 0
    %574 = vmatpush1.bf16.msra.mxu0 %v526
    %575 = vmatprep.mubr.bf16.mxu0 %v407
    %576 = vmatmul.mubr.bf16.gmra.mrb[0].mxu0 %v406
    %v577 = vpop.f32.mrb[0].mxu0
    %v578 = vadd.f32 %v445, %v577
    %v579 = vpop.f32.mrb[0].mxu0
    %v580 = vpop.f32.mrb[0].mxu0
    %v581 = vpop.f32.mrb[0].mxu0
    %582 = vdwg.mxu0
    %v583 = vmax.f32 %v578, -20.0
    %v584 = vmin.f32 %v583, 2.0
    %v585 = vmul.f32 %v584, 1.442695
    %v586 = vpow.pop %v585
    %v587 = vld [vmem:[%s7] sm:$0x1]
    %vm588 = vcmp.ne.s32.totalorder %v587, 0
    %v589 = vsel %vm588, 1, 0
    %v590 = vlaneseq
    %v591 = vshrl.u32 %v590, 7
    %v592 = vsub.s32 0, %v591
    %v593 = vrot.slane %v589, %v592
    %vm594 = vcmp.eq.s32.totalorder %v593, 1
    %v595 = vsel %vm594, %v586, %v578
    %596 = vst [vmem:[#allocation10] sm:$0xff] %v595
    // Predicated region
    $region50: #{tpu_custom_call.1} parent=1 // pred_check
      _
    $region51: #{tpu_custom_call.1} parent=1 // pred_check_branch
      %598 = sbr.rel (0) target = $region53
    $region52: #{tpu_custom_call.1} parent=1 // pred_region
      %s600 = ssub.s32 128, 128
      %601 = vsyncadd [#allocation4], %s600
      %s603 = sshll.u32 [#allocation10], 4
      %s604 = int_to_ptr.vmem [resolvable:$true] %s603
      %606 = dma.vmem_to_hbm [thread:$0]  %s604, 128, %s8, [#allocation4]
    $region53: #{tpu_custom_call.1} parent=1 // pred_fallthru
      _
    // Predicated region
    $region54: #{tpu_custom_call.1} parent=1 // pred_check
      _
    $region55: #{tpu_custom_call.1} parent=1 // pred_check_branch
      %608 = sbr.rel (0) target = $region57
    $region56: #{tpu_custom_call.1} parent=1 // pred_region
      %609 = dma.done [#allocation4], 128
    $region57: #{tpu_custom_call.1} parent=1 // pred_fallthru
      _
    %610 = vsyncpa [#allocation3], 1
    %611 = vsyncpa [#allocation6], 1
    %612 = vsyncpa [#allocation9], 1
    %613 = vsyncpa [#allocation4], 1

</llo_original>
